<compile_context>
chip_gen: v7x
topology: tpu7x:2x2x1
jax: 0.10.0
libtpu: 0.0.40
codegen_flags: <defaults>
</compile_context>

<pallas_src>
import math

import jax
import jax.numpy as jnp
from jax.experimental import pallas as pl
from jax.experimental.pallas import tpu as pltpu


def _round_up(x: int, m: int) -> int:
    return ((x + m - 1) // m) * m


def _cdiv(a: int, b: int) -> int:
    return -(-a // b)


def _sinusoidal_kernel(time_ref, table_ref, out_ref):
    """time_ref: [TB, 1] f32; table_ref: [2, Dp] f32 (row0=freq, row1=phase);
    out_ref: [TB, Dp].

    out[b, d] = sin(time[b] * freq[d] + phase[d])
    cos(x) == sin(x + pi/2) folds both halves into one transcendental pass and
    one lane-dense store; padded columns have freq=phase=0 -> sin(0)=0.
    """
    t = time_ref[...]                    # [TB, 1]
    f = table_ref[0:1, :]                # [1, Dp]  (static slice: free view)
    p = table_ref[1:2, :]                # [1, Dp]
    out_ref[...] = jnp.sin(t * f + p).astype(out_ref.dtype)


def _choose_batch_tile(b: int, d_pad: int, block_b: int) -> int:
    """Pick a batch-tile size that (a) fits v5e's scoped-VMEM default with
    double buffering, (b) balances work across grid steps to minimize batch
    padding, and (c) yields >= 2 steps for large batches so v7x megacore
    ("parallel" axis) can shard the work across both TensorCores."""
    # Conservative VMEM budget (v5e scoped default is 16 MiB; leave headroom).
    vmem_budget = 12 * 1024 * 1024
    # Per batch-row bytes: double-buffered output tile + double-buffered,
    # lane-padded [tb, 1]->[tb, 128] time tile. The [2, d_pad] table is tiny.
    bytes_per_row = 2 * (d_pad * 4) + 2 * (128 * 4)
    tb_cap = max(8, (vmem_budget // bytes_per_row) // 8 * 8)
    tb_cap = min(tb_cap, _round_up(block_b, 8))

    # >= 2 parallel steps for big batches (v7x has 2 TCs); 1 step otherwise
    # (on v5e/v6e the grid is a serial loop -> extra steps are pure overhead).
    min_steps = 2 if b > 1024 else 1
    n_steps = max(min_steps, _cdiv(b, tb_cap))
    tb = _round_up(_cdiv(b, n_steps), 8)     # balanced: <8 padded rows per step
    return min(tb, tb_cap)


def sinusoidal_position_embeddings(
    time: jax.Array,
    dim: int,
    *,
    block_b: int = 2048,
    out_dtype=jnp.float32,
    return_padded: bool = False,
) -> jax.Array:
    """Pallas equivalent of SinusoidalPositionEmbeddings(dim)(time).

    Args:
        time: [B] array of diffusion timesteps (cast to float32).
        dim:  embedding dimension (>= 4; dim in {2,3} divides by zero, as in
              the PyTorch module).
        block_b: max batch-tile size (auto-capped for VMEM / balanced).
        out_dtype: output dtype; bf16 halves HBM writeback if the consumer
              accepts it (compute stays f32). Default f32 matches the reference.
        return_padded: if True, return the padded [B_pad, D_pad] slab (consumer
              reads the [:B, :dim] window; padded rows/cols are NOT all zero —
              the cos-half columns of padded rows are 1). Default False returns
              the exact [B, dim] result of the PyTorch module.
    Returns:
        [B, dim] (or padded slab) embeddings:
            out[:, :dim//2] = sin(t * freqs), out[:, dim//2:2*(dim//2)] = cos(t * freqs),
            plus a zero last column when dim is odd (matches F.pad in the module).
    """
    assert time.ndim == 1, "time must be [batch_size]"
    assert dim >= 4, "dim must be >= 4 (dim//2 - 1 == 0 otherwise, as in the PyTorch module)"

    b = int(time.shape[0])
    half = dim // 2
    d_pad = _round_up(dim, 128)          # lane-dense output slab

    # Frequency / phase table, built once with XLA (constant-folded per dim).
    # Row 0 = frequencies, row 1 = phase (pi/2 on the cos half); padded cols 0.
    scale = math.log(10000.0) / (half - 1)
    base = jnp.exp(jnp.arange(half, dtype=jnp.float32) * (-scale))            # [half]
    freq_row = (jnp.zeros((d_pad,), jnp.float32)
                .at[:half].set(base)
                .at[half:2 * half].set(base))                                 # [Dp]
    phase_row = (jnp.zeros((d_pad,), jnp.float32)
                 .at[half:2 * half].set(jnp.float32(math.pi / 2.0)))          # [Dp]
    table = jnp.stack([freq_row, phase_row], axis=0)                          # [2, Dp]

    # Batch tiling: balanced, VMEM-capped, >=2 steps for large batches (v7x).
    tb = _choose_batch_tile(b, d_pad, block_b)
    b_pad = _round_up(b, tb)
    time_col = (jnp.zeros((b_pad, 1), jnp.float32)
                .at[:b, 0].set(time.astype(jnp.float32)))                     # [Bp, 1]

    grid = (b_pad // tb,)
    out = pl.pallas_call(
        _sinusoidal_kernel,
        out_shape=jax.ShapeDtypeStruct((b_pad, d_pad), out_dtype),
        grid=grid,
        in_specs=[
            pl.BlockSpec((tb, 1), lambda i: (i, 0)),        # time column per batch tile
            pl.BlockSpec((2, d_pad), lambda i: (0, 0)),     # freq+phase table (resident)
        ],
        out_specs=pl.BlockSpec((tb, d_pad), lambda i: (i, 0)),
        compiler_params=pltpu.CompilerParams(
            dimension_semantics=("parallel",)),             # megacore-shardable on v7x
    )(time_col, table)

    if return_padded:
        return out
    # TODO(synk): when fused into the downstream time-MLP kernel, drop this
    # slice and read the [:b, :dim] window of the padded slab directly.
    return out[:b, :dim]


def _reference(time: jax.Array, dim: int) -> jax.Array:
    """Pure-JAX reference mirroring the PyTorch forward exactly."""
    half = dim // 2
    scale = math.log(10000.0) / (half - 1)
    freqs = jnp.exp(jnp.arange(half, dtype=jnp.float32) * (-scale))
    args = time.astype(jnp.float32)[:, None] * freqs[None, :]
    emb = jnp.concatenate((jnp.sin(args), jnp.cos(args)), axis=-1)
    if dim % 2 == 1:
        emb = jnp.pad(emb, ((0, 0), (0, 1)))
    return emb


if __name__ == "__main__":
    key = jax.random.PRNGKey(0)

    # Tolerance note: arguments reach |t*f| ~ 1e3, so Mosaic's sine (and the
    # cos(x)=sin(x+pi/2) rewrite, which adds pi/2 before f32 argument reduction)
    # can differ from XLA's sin/cos by up to ~1e-4 absolute. Values are O(1),
    # so 5e-3 is still a strict functional check (layout/formula bugs are O(1)).
    for batch, dim in ((8, 32), (5, 33), (130, 64)):
        key, sub = jax.random.split(key)
        # Deterministic diffusion-style timesteps: integers in [0, 1000).
        time = jax.random.randint(sub, (batch,), 0, 1000).astype(jnp.float32)

        out = sinusoidal_position_embeddings(time, dim)
        out = jax.block_until_ready(out)
        ref = _reference(time, dim)

        assert out.shape == (batch, dim), out.shape
        assert jnp.allclose(out, ref, atol=5e-3, rtol=5e-3), (
            f"mismatch vs reference (batch={batch}, dim={dim}): "
            f"max |diff| = {jnp.max(jnp.abs(out - ref))}")

    print("KERNEL_OK")
</pallas_src>

<mosaic_0001>
module attributes {stable_mosaic.version = 11 : i64} {
  func.func @_sinusoidal_kernel(%arg0: i32, %arg1: memref<8x1xf32, #tpu.memory_space<vmem>>, %arg2: memref<2x128xf32, #tpu.memory_space<vmem>>, %arg3: memref<8x128xf32, #tpu.memory_space<vmem>>) attributes {dimension_semantics = [#tpu.dimension_semantics<parallel>], iteration_bounds = array<i64: 1>, scalar_prefetch = 0 : i64, scratch_operands = 0 : i64, tpu.core_type = #tpu.core_type<tc>, window_params = [{transform_indices = @transform_0, window_bounds = array<i64: 8, 1>}, {pipeline_mode = #tpu.pipeline_mode<synchronous>, transform_indices = @transform_1, window_bounds = array<i64: 2, 128>}, {transform_indices = @transform_2, window_bounds = array<i64: 8, 128>}]} {
    %c0 = arith.constant 0 : index
    %c0_0 = arith.constant 0 : index
    %0 = vector.load %arg1[%c0, %c0_0] : memref<8x1xf32, #tpu.memory_space<vmem>>, vector<8x1xf32>
    %c0_1 = arith.constant 0 : index
    %c0_2 = arith.constant 0 : index
    %1 = vector.load %arg2[%c0_1, %c0_2] : memref<2x128xf32, #tpu.memory_space<vmem>>, vector<1x128xf32>
    %c1 = arith.constant 1 : index
    %c0_3 = arith.constant 0 : index
    %2 = vector.load %arg2[%c1, %c0_3] : memref<2x128xf32, #tpu.memory_space<vmem>>, vector<1x128xf32>
    %3 = vector.broadcast %0 : vector<8x1xf32> to vector<8x128xf32>
    %4 = vector.broadcast %1 : vector<1x128xf32> to vector<8x128xf32>
    %5 = arith.mulf %3, %4 : vector<8x128xf32>
    %6 = vector.broadcast %2 : vector<1x128xf32> to vector<8x128xf32>
    %7 = arith.addf %5, %6 : vector<8x128xf32>
    %8 = math.sin %7 : vector<8x128xf32>
    %c0_4 = arith.constant 0 : index
    %c0_5 = arith.constant 0 : index
    %9 = vector.load %arg3[%c0_4, %c0_5] : memref<8x128xf32, #tpu.memory_space<vmem>>, vector<8x128xf32>
    tpu.vector_store %arg3[%c0_4, %c0_5], %8 {strides = array<i32>} : memref<8x128xf32, #tpu.memory_space<vmem>>, vector<8x128xf32>,
    return
  }
  func.func @transform_0(%arg0: i32) -> (i32, i32) {
    %c0_i32 = arith.constant 0 : i32
    %c0_i32_0 = arith.constant 0 : i32
    return %arg0, %c0_i32 : i32, i32
  }
  func.func @transform_1(%arg0: i32) -> (i32, i32) {
    %c0_i32 = arith.constant 0 : i32
    %c0_i32_0 = arith.constant 0 : i32
    %c0_i32_1 = arith.constant 0 : i32
    return %c0_i32, %c0_i32_0 : i32, i32
  }
  func.func @transform_2(%arg0: i32) -> (i32, i32) {
    %c0_i32 = arith.constant 0 : i32
    %c0_i32_0 = arith.constant 0 : i32
    return %arg0, %c0_i32 : i32, i32
  }
}

</mosaic_0001>

<llo_original>
// kernel: tpu_custom_call.1
$region0: #{tpu_custom_call.1}
  #allocation0 [shape = 'u32[]', space=smem, size = 0x4, offset = 0x4, fixed_abs, tag = 'smem constant byte address 0x4 - core index']
  #allocation1 [shape = 'u32[144,128]{1,0:T(1,128)}', space=vmem, size = 0x12000, scoped, tag = 'internal scratch']
  %s0 = inlined_call_operand.vmem [shape: f32[8,1], index: 0, kind: input, shape index: {}]
  %s1 = inlined_call_operand.vmem [shape: f32[2,128], index: 1, kind: input, shape index: {}]
  %s2 = inlined_call_operand.hbm [shape: f32[8,128], index: 2, kind: output, shape index: {}]
  %s3 = sld [smem:[#allocation0]]
  $region18: #{tpu_custom_call.1} parent=0
    _
  %s5 = ssub.s32 1, %s3
  %s6 = scalar_select 0, %s5, %s3
  $region1: #{tpu_custom_call.1} parent=0
    #allocation2 [shape = 'u8[4096]{0}', space=vmem, size = 0x1000, scoped, tag = 'output window, operand 0, single buffered']
    #allocation3 [shape = 's32[1]{0}', space=sflag, size = 0x4, scoped, tag = 'scoped memory for tpu_custom_call.1']
    %7 = vsyncpa [#allocation3], 0
    // Predicated region
    $region2: #{tpu_custom_call.1} parent=1 // pred_check
      _
    $region3: #{tpu_custom_call.1} parent=1 // pred_check_branch
      %9 = sbr.rel (0) target = $region5
    $region4: #{tpu_custom_call.1} parent=1 // pred_region
      _
    $region5: #{tpu_custom_call.1} parent=1 // pred_fallthru
      _
    // Predicated region
    $region6: #{tpu_custom_call.1} parent=1 // pred_check
      _
    $region7: #{tpu_custom_call.1} parent=1 // pred_check_branch
      %11 = sbr.rel (0) target = $region9
    $region8: #{tpu_custom_call.1} parent=1 // pred_region
      _
    $region9: #{tpu_custom_call.1} parent=1 // pred_fallthru
      _
    %v12 = vld [vmem:[%s0] sm:$0xff]
    %v13 = vld [vmem:[%s1] sm:$0x1]
    %v14 = vld [vmem:[%s1 + $0x1] sm:$0x1]
    %16 = vset.pattern.permute.xlu0 0
    %17 = vperm.xlu0 %16, %v12
    %v18 = vpop.permute.xlu0 %17
    %v20 = vlaneseq
    %v21 = vshrl.u32 %v20, 7
    %v22 = vsub.s32 0, %v21
    %v23 = vrot.slane %v13, %v22
    %v24 = vmul.f32 %v18, %v23
    %v25 = vlaneseq
    %v26 = vshrl.u32 %v25, 7
    %v27 = vsub.s32 0, %v26
    %v28 = vrot.slane %v14, %v27
    %v29 = vadd.f32 %v24, %v28
    %v30 = vand.u32 2147483647, %v29
    %vm31 = vcmp.le.f32.partialorder %v30, 0.7853982
    %vm32 = vcmp.lt.s32.totalorder %v29, 0
    %v33 = vand.u32 %v29, 2139095040
    %v34 = vshrl.u32 %v33, 23
    %v35 = vsub.s32 %v34, 127
    %v36 = vand.u32 2147483647, %v29
    %v37 = vand.u32 %v36, 8388607
    %v38 = vor.u32 %v37, 8388608
    %v39 = vsub.s32 0, %v38
    %v40 = vadd.s32 %v35, 1
    %vm41 = vcmp.gt.s32.totalorder %v40, 0
    %v42 = vsel %vm41, %v40, 0
    %v43 = vshrl.u32 %v42, 5
    %v44 = vand.u32 %v42, 31
    %v45 = vsub.s32 32, %v44
    %v46 = vshrl.u32 683565275, %v45
    %v47 = vshll.u32 683565275, %v44
    %v48 = vshrl.u32 2475754826, %v45
    %v49 = vor.u32 %v47, %v48
    %v50 = vshll.u32 2475754826, %v44
    %v51 = vshrl.u32 2131351028, %v45
    %v52 = vor.u32 %v50, %v51
    %v53 = vshll.u32 2131351028, %v44
    %v54 = vshrl.u32 2102212464, %v45
    %v55 = vor.u32 %v53, %v54
    %v56 = vshll.u32 2102212464, %v44
    %v57 = vshrl.u32 920167782, %v45
    %v58 = vor.u32 %v56, %v57
    %v59 = vshll.u32 920167782, %v44
    %v60 = vshrl.u32 1326507024, %v45
    %v61 = vor.u32 %v59, %v60
    %vm62 = vcmp.lt.s32.totalorder %v43, 1
    %vm63 = vcmp.lt.s32.totalorder %v43, 2
    %vm64 = vcmp.lt.s32.totalorder %v43, 3
    %vm65 = vcmp.lt.s32.totalorder %v43, 4
    %v66 = vsel %vm62, %v46, %v49
    %v67 = vsel %vm65, %v55, 2102212464
    %v68 = vsel %vm64, %v52, %v67
    %v69 = vsel %vm63, %v66, %v68
    %v70 = vsel %vm62, %v49, %v52
    %v71 = vsel %vm65, %v58, 920167782
    %v72 = vsel %vm64, %v55, %v71
    %v73 = vsel %vm63, %v70, %v72
    %v74 = vsel %vm62, %v52, %v55
    %v75 = vsel %vm65, %v61, 1326507024
    %v76 = vsel %vm64, %v58, %v75
    %v77 = vsel %vm63, %v74, %v76
    %v78 = vshll.u32 %v38, 8
    %v79 = vmul.u32.u64.compose %v78, %v77
    %v80 = vextract.low.u32 %v79
    %v81 = vextract.high.u32 %v79
    %v82 = vmul.u32.u64.compose %v78, %v73
    %v83 = vextract.low.u32 %v82
    %v84 = vextract.high.u32 %v82
    %v85 = vmul.u32 %v78, %v69
    %v86 = vadd.s32 %v81, %v83
    %vm87 = vc.u32 %v81, %v83
    %v88 = vadd.s32 %v84, 1
    %v89 = vsel %vm87, %v88, %v84
    %v90 = vadd.s32 %v85, %v89
    %v91 = vadd.s32 %v90, 536870912
    %v92 = vshrl.u32 %v91, 30
    %v93 = vshll.u32 %v92, 30
    %v94 = vsub.s32 %v90, %v93
    %vm95 = vcmp.lt.s32.totalorder %v94, 0
    %v96 = vsub.s32 0, %v94
    %v97 = vsel %vm95, %v96, %v94
    %v98 = vclz %v97
    %v99 = vsub.s32 %v98, 2
    %vm100 = vcmp.gt.s32.totalorder 0, %v99
    %v101 = vsel %vm100, 0, %v99
    %v102 = vsub.s32 32, %v101
    %v103 = vshll.u32 %v94, %v101
    %v104 = vshrl.u32 %v86, %v102
    %v105 = vor.u32 %v103, %v104
    %v106 = vsub.s32 4294967266, %v101
    %v107 = vadd.s32 %v106, 127
    %v108 = vshll.u32 %v107, 23
    %v109 = vor.u32 4788187, %v108
    %v110 = vand.u32 2147483647, %v109
    %v112 = vcvt.s32.f32 %v105
    %v113 = vmul.f32 %v112, %v110
    %v114 = vxor.u32 %v113, 2147483648
    %v115 = vsel %vm32, %v114, %v113
    %v116 = vsub.s32 4, %v92
    %v117 = vsel %vm32, %v116, %v92
    %v118 = vsel %vm31, %v29, %v115
    %v119 = vsel %vm31, 0, %v117
    %v120 = vcosq.f32.pop %v118
    %v121 = vsinq.f32.pop %v118
    %vm122 = vweird.f32 %v29
    %v123 = vadd.s32 %v119, 3
    %v124 = vand.u32 %v123, 3
    %vm125 = vcmp.lt.s32.totalorder %v124, 2
    %vm126 = vcmp.eq.s32.totalorder %v124, 0
    %v127 = vxor.u32 %v121, 2147483648
    %v128 = vsel %vm126, %v120, %v127
    %vm129 = vcmp.eq.s32.totalorder %v124, 2
    %v130 = vxor.u32 %v120, 2147483648
    %v131 = vsel %vm129, %v130, %v121
    %v132 = vsel %vm125, %v128, %v131
    %v133 = vsel %vm122, nan, %v132
    %134 = vst [vmem:[#allocation2] sm:$0xff] %v133
    // Predicated region
    $region10: #{tpu_custom_call.1} parent=1 // pred_check
      _
    $region11: #{tpu_custom_call.1} parent=1 // pred_check_branch
      %136 = sbr.rel (0) target = $region13
    $region12: #{tpu_custom_call.1} parent=1 // pred_region
      %s138 = ssub.s32 128, 128
      %139 = vsyncadd [#allocation3], %s138
      %s141 = sshll.u32 [#allocation2], 4
      %s142 = int_to_ptr.vmem [resolvable:$true] %s141
      %144 = dma.vmem_to_hbm [thread:$0]  %s142, 128, %s2, [#allocation3]
    $region13: #{tpu_custom_call.1} parent=1 // pred_fallthru
      _
    // Predicated region
    $region14: #{tpu_custom_call.1} parent=1 // pred_check
      _
    $region15: #{tpu_custom_call.1} parent=1 // pred_check_branch
      %146 = sbr.rel (0) target = $region17
    $region16: #{tpu_custom_call.1} parent=1 // pred_region
      %147 = dma.done [#allocation3], 128
    $region17: #{tpu_custom_call.1} parent=1 // pred_fallthru
      _
    %148 = vsyncpa [#allocation3], 1

</llo_original>
